<compile_context>
chip_gen: v6e
topology: v6e:2x2x1
jax: 0.10.0
libtpu: 0.0.40
codegen_flags: <defaults>
</compile_context>

<pallas_src>
import jax
import jax.numpy as jnp
from jax.experimental import pallas as pl
from jax.experimental.pallas import tpu as pltpu


def _round_up(x, m):
    return ((x + m - 1) // m) * m


def _aligned_divisor_tile(total, align, cap, want_tiles=1):
    """Largest t with t % align == 0, total % t == 0, t <= cap, preferring
    choices that yield at least `want_tiles` tiles (megacore work split)."""
    blocks = total // align
    cap = max(cap, align)
    cands = [d * align for d in range(1, blocks + 1)
             if blocks % d == 0 and d * align <= cap]
    pref = [t for t in cands if total // t >= want_tiles]
    return max(pref) if pref else max(cands)


# ---------------------------------------------------------------------------
# Kernels
# ---------------------------------------------------------------------------

def _fused_kernel(x_ref, w_ref, b_ref, o_ref):
    # Resident-W path: single K block -> no accumulator scratch, no init, no
    # finalize re-read.  x/W are bf16, dot accumulates in f32 on the MXU.
    y = jnp.dot(x_ref[...], w_ref[...], preferred_element_type=jnp.float32)
    o_ref[...] = jnp.maximum(y + b_ref[...], 0.0).astype(o_ref.dtype)


def _ktiled_kernel(x_ref, w_ref, b_ref, o_ref, acc_ref):
    # Fallback path when W does not fit VMEM: standard K-reduction with an f32
    # accumulator; bias seeds the accumulator at k==0 (no finalize add).
    k = pl.program_id(2)

    @pl.when(k == 0)
    def _():
        acc_ref[...] = jnp.broadcast_to(b_ref[...], acc_ref.shape)

    acc_ref[...] += jnp.dot(x_ref[...], w_ref[...],
                            preferred_element_type=jnp.float32)

    @pl.when(k == pl.num_programs(2) - 1)
    def _():
        o_ref[...] = jnp.maximum(acc_ref[...], 0.0).astype(o_ref.dtype)


# ---------------------------------------------------------------------------
# Wrapper (== Parametric_Layer.forward with params_and_consts=[W, b] and
# map_over_batch=[0, None, None]; the vmap over batch is realized by
# flattening (B, T) into the M dimension of a single matmul).
# ---------------------------------------------------------------------------

def parametric_layer(x, W, b, *, force_w_resident=None):
    B, T, Din = x.shape
    Dout = W.shape[1]
    M = B * T

    BF16, F32 = 2, 4
    M_ALIGN, LANE = 16, 128            # bf16 sublane packing => 16-row tiles
    VMEM_BUDGET = 24 << 20             # conservative plan, fits v5e/v6e/v7x

    M_p = _round_up(M, M_ALIGN)
    K_p = _round_up(Din, LANE)
    N_p = _round_up(Dout, LANE)

    # bf16 operands for the MXU; pad only when actually misaligned (static
    # checks => no extra XLA pad/slice ops for aligned shapes).  Zero-padded K
    # contributes zero to the reduction; padded M/N rows/cols are sliced off.
    x2 = x.reshape(M, Din).astype(jnp.bfloat16)
    Wb = W.astype(jnp.bfloat16)
    b2 = b.reshape(1, Dout).astype(jnp.float32)
    if (M_p, K_p) != (M, Din):
        x2 = jnp.pad(x2, ((0, M_p - M), (0, K_p - Din)))
    if (K_p, N_p) != (Din, Dout):
        Wb = jnp.pad(Wb, ((0, K_p - Din), (0, N_p - Dout)))
    if N_p != Dout:
        b2 = jnp.pad(b2, ((0, 0), (0, N_p - Dout)))

    w_resident = 2 * K_p * N_p * BF16 <= (VMEM_BUDGET // 2)
    if force_w_resident is not None:
        w_resident = bool(force_w_resident)

    if w_resident:
        # ---- fast path: W stays in VMEM, x streamed exactly once ----------
        TILE_K, TILE_N = K_p, N_p
        per_row = 2 * (K_p * BF16 + N_p * F32)      # 2x-buffered x row + out row
        m_cap = max(M_ALIGN,
                    min(512, ((VMEM_BUDGET // 2) // per_row) // M_ALIGN * M_ALIGN))
        # Prefer >= 2 M tiles so both v7x TensorCores get work (N tiles == 1).
        TILE_M = _aligned_divisor_tile(M_p, M_ALIGN, m_cap, want_tiles=2)

        grid = (M_p // TILE_M, N_p // TILE_N)
        kernel = _fused_kernel
        in_specs = [
            pl.BlockSpec((TILE_M, TILE_K), lambda i, j: (i, 0)),
            pl.BlockSpec((TILE_K, TILE_N), lambda i, j: (0, j)),  # resident
            pl.BlockSpec((1, TILE_N), lambda i, j: (0, j)),       # resident
        ]
        out_spec = pl.BlockSpec((TILE_M, TILE_N), lambda i, j: (i, j))
        scratch = []
        semantics = ("parallel", "parallel")
    else:
        # ---- fallback: K-tiled accumulation (very large K*N only) ---------
        TILE_K = _aligned_divisor_tile(K_p, LANE, 512)
        TILE_N = _aligned_divisor_tile(N_p, LANE, 512)
        TILE_M = _aligned_divisor_tile(M_p, M_ALIGN, 256, want_tiles=2)

        grid = (M_p // TILE_M, N_p // TILE_N, K_p // TILE_K)
        kernel = _ktiled_kernel
        in_specs = [
            pl.BlockSpec((TILE_M, TILE_K), lambda i, j, k: (i, k)),
            pl.BlockSpec((TILE_K, TILE_N), lambda i, j, k: (k, j)),
            pl.BlockSpec((1, TILE_N), lambda i, j, k: (0, j)),
        ]
        out_spec = pl.BlockSpec((TILE_M, TILE_N), lambda i, j, k: (i, j))
        scratch = [pltpu.VMEM((TILE_M, TILE_N), jnp.float32)]
        semantics = ("parallel", "parallel", "arbitrary")

    cost = pl.CostEstimate(
        flops=2 * M_p * K_p * N_p,
        transcendentals=0,
        bytes_accessed=(M_p * K_p * BF16 + K_p * N_p * BF16
                        + N_p * F32 + M_p * N_p * F32),
    )

    out = pl.pallas_call(
        kernel,
        out_shape=jax.ShapeDtypeStruct((M_p, N_p), jnp.float32),
        grid_spec=pltpu.PrefetchScalarGridSpec(
            num_scalar_prefetch=0,
            grid=grid,
            in_specs=in_specs,
            out_specs=out_spec,
            scratch_shapes=scratch,
        ),
        compiler_params=pltpu.CompilerParams(
            dimension_semantics=semantics,
            # Explicit scoped-VMEM limit: covers the <=24 MiB plan on v5e
            # (16 MiB default) and stays inside v7x's 64 MiB physical VMEM.
            vmem_limit_bytes=32 << 20,
        ),
        cost_estimate=cost,
    )(x2, Wb, b2)

    if (M_p, N_p) != (M, Dout):
        out = out[:M, :Dout]
    return out.reshape(B, T, Dout)


def _reference(x, W, b):
    # vmap(fn, in_dims=(0, None, None))(x, W, b) == batched affine + ReLU,
    # matching the kernel's bf16-input / f32-accumulate numerics.
    Wb = W.astype(jnp.bfloat16)
    xb = x.astype(jnp.bfloat16)
    y = jax.vmap(lambda xi: jnp.dot(xi, Wb, preferred_element_type=jnp.float32))(xb)
    return jnp.maximum(y + b.astype(jnp.float32), 0.0)


if __name__ == "__main__":
    # --- Small test (shapes implied by the module's nnodely usage) ---------
    kx, kw, kb = jax.random.split(jax.random.PRNGKey(0), 3)
    B, T, Din, Dout = 2, 8, 32, 32
    x = jax.random.normal(kx, (B, T, Din), dtype=jnp.float32)
    W = jax.random.normal(kw, (Din, Dout), dtype=jnp.float32) * 0.1
    b = jax.random.normal(kb, (Dout,), dtype=jnp.float32) * 0.1

    out = jax.block_until_ready(parametric_layer(x, W, b))
    ref = _reference(x, W, b)
    assert out.shape == (B, T, Dout)
    assert jnp.allclose(out, ref, atol=1e-2, rtol=1e-2), "mismatch (small)"

    # --- Medium test: resident-W single-pass path, zero wrapper padding ----
    # (M = 400 is a multiple of 16, Din/Dout = 640 are multiples of 128.)
    kx2, kw2, kb2 = jax.random.split(jax.random.PRNGKey(1), 3)
    B2, T2, Din2, Dout2 = 2, 200, 640, 640
    x2 = jax.random.normal(kx2, (B2, T2, Din2), dtype=jnp.float32)
    W2 = jax.random.normal(kw2, (Din2, Dout2), dtype=jnp.float32) * 0.05
    b2 = jax.random.normal(kb2, (Dout2,), dtype=jnp.float32) * 0.05

    out2 = jax.block_until_ready(parametric_layer(x2, W2, b2))
    ref2 = _reference(x2, W2, b2)
    assert out2.shape == (B2, T2, Dout2)
    assert jnp.allclose(out2, ref2, atol=2e-2, rtol=2e-2), "mismatch (medium)"

    # --- Fallback path test: force the K-tiled accumulator kernel ----------
    out3 = jax.block_until_ready(
        parametric_layer(x2, W2, b2, force_w_resident=False))
    assert jnp.allclose(out3, ref2, atol=2e-2, rtol=2e-2), "mismatch (ktiled)"

    print("KERNEL_OK")
</pallas_src>

<mosaic_0001>
module attributes {stable_mosaic.version = 11 : i64} {
  func.func @_fused_kernel(%arg0: i32, %arg1: i32, %arg2: memref<16x128xbf16, #tpu.memory_space<vmem>>, %arg3: memref<128x128xbf16, #tpu.memory_space<vmem>>, %arg4: memref<1x128xf32, #tpu.memory_space<vmem>>, %arg5: memref<16x128xf32, #tpu.memory_space<vmem>>) attributes {dimension_semantics = [#tpu.dimension_semantics<parallel>, #tpu.dimension_semantics<parallel>], iteration_bounds = array<i64: 1, 1>, scalar_prefetch = 0 : i64, scratch_operands = 0 : i64, tpu.core_type = #tpu.core_type<tc>, window_params = [{transform_indices = @transform_0, window_bounds = array<i64: 16, 128>}, {transform_indices = @transform_1, window_bounds = array<i64: 128, 128>}, {transform_indices = @transform_2, window_bounds = array<i64: 1, 128>}, {transform_indices = @transform_3, window_bounds = array<i64: 16, 128>}]} {
    %c0 = arith.constant 0 : index
    %c0_0 = arith.constant 0 : index
    %0 = vector.load %arg2[%c0, %c0_0] : memref<16x128xbf16, #tpu.memory_space<vmem>>, vector<16x128xbf16>
    %c0_1 = arith.constant 0 : index
    %c0_2 = arith.constant 0 : index
    %1 = vector.load %arg3[%c0_1, %c0_2] : memref<128x128xbf16, #tpu.memory_space<vmem>>, vector<128x128xbf16>
    %cst = arith.constant dense<0.000000e+00> : vector<16x128xf32>
    %2 = tpu.matmul %0, %1, %cst {dimension_numbers = #tpu.dot_dimension_numbers<[1], [0], [0], [1], [0, 0, 1, 1], [], []>} : vector<16x128xbf16>, vector<128x128xbf16>, vector<16x128xf32> -> vector<16x128xf32>
    %c0_3 = arith.constant 0 : index
    %c0_4 = arith.constant 0 : index
    %3 = vector.load %arg4[%c0_3, %c0_4] : memref<1x128xf32, #tpu.memory_space<vmem>>, vector<1x128xf32>
    %4 = vector.broadcast %3 : vector<1x128xf32> to vector<16x128xf32>
    %5 = arith.addf %2, %4 : vector<16x128xf32>
    %cst_5 = arith.constant 0.000000e+00 : f32
    %6 = vector.broadcast %cst_5 : f32 to vector<16x128xf32>
    %7 = arith.maximumf %5, %6 : vector<16x128xf32>
    %c0_6 = arith.constant 0 : index
    %c0_7 = arith.constant 0 : index
    %8 = vector.load %arg5[%c0_6, %c0_7] : memref<16x128xf32, #tpu.memory_space<vmem>>, vector<16x128xf32>
    tpu.vector_store %arg5[%c0_6, %c0_7], %7 {strides = array<i32>} : memref<16x128xf32, #tpu.memory_space<vmem>>, vector<16x128xf32>,
    return
  }
  func.func @transform_0(%arg0: i32, %arg1: i32) -> (i32, i32) {
    %c0_i32 = arith.constant 0 : i32
    %c0_i32_0 = arith.constant 0 : i32
    return %arg0, %c0_i32 : i32, i32
  }
  func.func @transform_1(%arg0: i32, %arg1: i32) -> (i32, i32) {
    %c0_i32 = arith.constant 0 : i32
    %c0_i32_0 = arith.constant 0 : i32
    return %c0_i32, %arg1 : i32, i32
  }
  func.func @transform_2(%arg0: i32, %arg1: i32) -> (i32, i32) {
    %c0_i32 = arith.constant 0 : i32
    %c0_i32_0 = arith.constant 0 : i32
    return %c0_i32, %arg1 : i32, i32
  }
  func.func @transform_3(%arg0: i32, %arg1: i32) -> (i32, i32) {
    %c0_i32 = arith.constant 0 : i32
    return %arg0, %arg1 : i32, i32
  }
}

</mosaic_0001>

<llo_original>
// kernel: tpu_custom_call.1
$region0: #{tpu_custom_call.1}
  #allocation0 [shape = 'u32[]', space=smem, size = 0x4, offset = 0x4, fixed_abs, tag = 'smem constant byte address 0x4 - core index']
  #allocation1 [shape = 'u32[144,128]{1,0:T(1,128)}', space=vmem, size = 0x12000, scoped, tag = 'internal scratch']
  %s0 = inlined_call_operand.hbm [shape: bf16[16,128], index: 0, kind: input, shape index: {}]
  %s1 = inlined_call_operand.hbm [shape: bf16[128,128], index: 1, kind: input, shape index: {}]
  %s2 = inlined_call_operand.vmem [shape: f32[1,128], index: 2, kind: input, shape index: {}]
  %s3 = inlined_call_operand.hbm [shape: f32[16,128], index: 3, kind: output, shape index: {}]
  %s4 = sld [smem:[#allocation0]]
  $region30: #{tpu_custom_call.1} parent=0
    _
  %s6 = ssub.s32 1, %s4
  %s7 = scalar_select 0, %s6, %s4
  $region1: #{tpu_custom_call.1} parent=0
    #allocation2 [shape = 'u8[4096]{0}', space=vmem, size = 0x1000, scoped, tag = 'input window, operand 0, single buffered']
    #allocation3 [shape = 's32[1]{0}', space=sflag, size = 0x4, scoped, tag = 'scoped memory for tpu_custom_call.1']
    #allocation4 [shape = 's32[1]{0}', space=sflag, size = 0x4, scoped, tag = 'scoped memory for tpu_custom_call.1']
    #allocation5 [shape = 'u8[32768]{0}', space=vmem, size = 0x8000, scoped, tag = 'input window, operand 1, single buffered']
    #allocation6 [shape = 's32[1]{0}', space=sflag, size = 0x4, scoped, tag = 'scoped memory for tpu_custom_call.1']
    #allocation7 [shape = 'u8[8192]{0}', space=vmem, size = 0x2000, scoped, tag = 'output window, operand 0, single buffered']
    %8 = vsyncpa [#allocation3], 0
    %9 = vsyncpa [#allocation6], 0
    %10 = vsyncpa [#allocation4], 0
    // Predicated region
    $region2: #{tpu_custom_call.1} parent=1 // pred_check
      _
    $region3: #{tpu_custom_call.1} parent=1 // pred_check_branch
      %12 = sbr.rel (0) target = $region5
    $region4: #{tpu_custom_call.1} parent=1 // pred_region
      %s14 = ssub.s32 128, 128
      %15 = vsyncadd [#allocation3], %s14
      %s16 = sshll.u32 [#allocation2], 4
      %s17 = int_to_ptr.vmem [resolvable:$true] %s16
      %22 = dma.hbm_to_vmem [thread:$0]  %s0, 128, %s17, [#allocation3], 64, 64, 4
    $region5: #{tpu_custom_call.1} parent=1 // pred_fallthru
      _
    // Predicated region
    $region6: #{tpu_custom_call.1} parent=1 // pred_check
      _
    $region7: #{tpu_custom_call.1} parent=1 // pred_check_branch
      %24 = sbr.rel (0) target = $region9
    $region8: #{tpu_custom_call.1} parent=1 // pred_region
      %s26 = ssub.s32 1024, 1024
      %27 = vsyncadd [#allocation6], %s26
      %s28 = sshll.u32 [#allocation5], 4
      %s29 = int_to_ptr.vmem [resolvable:$true] %s28
      %34 = dma.hbm_to_vmem [thread:$0]  %s1, 1024, %s29, [#allocation6], 64, 64, 4
    $region9: #{tpu_custom_call.1} parent=1 // pred_fallthru
      _
    // Predicated region
    $region10: #{tpu_custom_call.1} parent=1 // pred_check
      _
    $region11: #{tpu_custom_call.1} parent=1 // pred_check_branch
      %36 = sbr.rel (0) target = $region13
    $region12: #{tpu_custom_call.1} parent=1 // pred_region
      _
    $region13: #{tpu_custom_call.1} parent=1 // pred_fallthru
      _
    // Predicated region
    $region14: #{tpu_custom_call.1} parent=1 // pred_check
      _
    $region15: #{tpu_custom_call.1} parent=1 // pred_check_branch
      %38 = sbr.rel (0) target = $region17
    $region16: #{tpu_custom_call.1} parent=1 // pred_region
      %39 = dma.done [#allocation3], 128
    $region17: #{tpu_custom_call.1} parent=1 // pred_fallthru
      _
    // Predicated region
    $region18: #{tpu_custom_call.1} parent=1 // pred_check
      _
    $region19: #{tpu_custom_call.1} parent=1 // pred_check_branch
      %41 = sbr.rel (0) target = $region21
    $region20: #{tpu_custom_call.1} parent=1 // pred_region
      %42 = dma.done [#allocation6], 1024
    $region21: #{tpu_custom_call.1} parent=1 // pred_fallthru
      _
    %v44 = vld [vmem:[#allocation2] sm:$0xf]
    %v45 = vld [vmem:[#allocation2 + $0x4] sm:$0xf]
    %v46 = vld [vmem:[#allocation5] sm:$0xf]
    %v47 = vld [vmem:[#allocation5 + $0x4] sm:$0xf]
    %v48 = vld [vmem:[#allocation5 + $0x8] sm:$0xf]
    %v49 = vld [vmem:[#allocation5 + $0xc] sm:$0xf]
    %v50 = vld [vmem:[#allocation5 + $0x10] sm:$0xf]
    %v51 = vld [vmem:[#allocation5 + $0x14] sm:$0xf]
    %v52 = vld [vmem:[#allocation5 + $0x18] sm:$0xf]
    %v53 = vld [vmem:[#allocation5 + $0x1c] sm:$0xf]
    %v54 = vld [vmem:[#allocation5 + $0x20] sm:$0xf]
    %v55 = vld [vmem:[#allocation5 + $0x24] sm:$0xf]
    %v56 = vld [vmem:[#allocation5 + $0x28] sm:$0xf]
    %v57 = vld [vmem:[#allocation5 + $0x2c] sm:$0xf]
    %v58 = vld [vmem:[#allocation5 + $0x30] sm:$0xf]
    %v59 = vld [vmem:[#allocation5 + $0x34] sm:$0xf]
    %v60 = vld [vmem:[#allocation5 + $0x38] sm:$0xf]
    %v61 = vld [vmem:[#allocation5 + $0x3c] sm:$0xf]
    %v62 = vld [vmem:[%s2] sm:$0x1]
    %v64 = vlaneseq
    %v65 = vshrl.u32 %v64, 7
    %v66 = vsub.s32 0, %v65
    %v67 = vrot.slane %v62, %v66
    %v71 = vunpack.c.l.b16 %v44
    %v72 = vunpack.c.l.b16 %v45
    %v73 = vpack.c.b16 %v72, %v71
    %v91 = vunpack.c.l.b16 %v46
    %v92 = vunpack.c.l.b16 %v47
    %v93 = vunpack.c.l.b16 %v48
    %v94 = vunpack.c.l.b16 %v49
    %v95 = vunpack.c.l.b16 %v50
    %v96 = vunpack.c.l.b16 %v51
    %v97 = vunpack.c.l.b16 %v52
    %v98 = vunpack.c.l.b16 %v53
    %v99 = vunpack.c.l.b16 %v54
    %v100 = vunpack.c.l.b16 %v55
    %v101 = vunpack.c.l.b16 %v56
    %v102 = vunpack.c.l.b16 %v57
    %v103 = vunpack.c.l.b16 %v58
    %v104 = vunpack.c.l.b16 %v59
    %v105 = vunpack.c.l.b16 %v60
    %v106 = vunpack.c.l.b16 %v61
    %v107 = vpack.c.b16 %v92, %v91
    %v108 = vpack.c.b16 %v94, %v93
    %v109 = vpack.c.b16 %v96, %v95
    %v110 = vpack.c.b16 %v98, %v97
    %v111 = vpack.c.b16 %v100, %v99
    %v112 = vpack.c.b16 %v102, %v101
    %v113 = vpack.c.b16 %v104, %v103
    %v114 = vpack.c.b16 %v106, %v105
    %123 = vmatprep.subr.bf16.mxu0 0
    %124 = vmatpush1.bf16.msra.mxu0 %v114
    %125 = vmatprep.subr.bf16.mxu0 0
    %126 = vmatpush1.bf16.msra.mxu0 %v113
    %127 = vmatprep.subr.bf16.mxu0 0
    %128 = vmatpush1.bf16.msra.mxu0 %v112
    %129 = vmatprep.subr.bf16.mxu0 0
    %130 = vmatpush1.bf16.msra.mxu0 %v111
    %131 = vmatprep.subr.bf16.mxu0 0
    %132 = vmatpush1.bf16.msra.mxu0 %v110
    %133 = vmatprep.subr.bf16.mxu0 0
    %134 = vmatpush1.bf16.msra.mxu0 %v109
    %135 = vmatprep.subr.bf16.mxu0 0
    %136 = vmatpush1.bf16.msra.mxu0 %v108
    %137 = vmatprep.subr.bf16.mxu0 0
    %138 = vmatpush1.bf16.msra.mxu0 %v107
    %139 = vmatprep.subr.bf16.mxu0 0
    %140 = vmatpush2.bf16.msra.mxu0 0
    %141 = vmatprep.subr.bf16.mxu0 0
    %142 = vmatpush2.bf16.msra.mxu0 0
    %143 = vmatprep.subr.bf16.mxu0 0
    %144 = vmatpush2.bf16.msra.mxu0 0
    %145 = vmatprep.subr.bf16.mxu0 0
    %146 = vmatpush2.bf16.msra.mxu0 0
    %147 = vmatprep.subr.bf16.mxu0 0
    %148 = vmatpush2.bf16.msra.mxu0 0
    %149 = vmatprep.subr.bf16.mxu0 0
    %150 = vmatpush2.bf16.msra.mxu0 0
    %151 = vmatprep.subr.bf16.mxu0 0
    %152 = vmatpush2.bf16.msra.mxu0 0
    %153 = vmatprep.subr.bf16.mxu0 0
    %154 = vmatpush2.bf16.msra.mxu0 0
    %155 = vmatprep.mubr.bf16.mxu0 0
    %156 = vmatmul.mubr.bf16.gmra.mxu0 %v73
    %v157 = vpop.f32.mrf.mxu0
    %v158 = vadd.f32 %v67, %v157
    %v159 = vpop.f32.mrf.mxu0
    %v160 = vpop.f32.mrf.mxu0
    %v161 = vadd.f32 %v67, %v160
    %v162 = vpop.f32.mrf.mxu0
    %163 = vdwg.mxu0
    %v164 = vmax.f32 %v158, 0.0
    %v165 = vmax.f32 %v161, 0.0
    %166 = vst [vmem:[#allocation7] sm:$0xff] %v164
    %167 = vst [vmem:[#allocation7 + $0x8] sm:$0xff] %v165
    // Predicated region
    $region22: #{tpu_custom_call.1} parent=1 // pred_check
      _
    $region23: #{tpu_custom_call.1} parent=1 // pred_check_branch
      %169 = sbr.rel (0) target = $region25
    $region24: #{tpu_custom_call.1} parent=1 // pred_region
      %s171 = ssub.s32 256, 256
      %172 = vsyncadd [#allocation4], %s171
      %s173 = sshll.u32 [#allocation7], 4
      %s174 = int_to_ptr.vmem [resolvable:$true] %s173
      %179 = dma.vmem_to_hbm [thread:$0]  %s174, 256, %s3, [#allocation4], 128, 128, 8
    $region25: #{tpu_custom_call.1} parent=1 // pred_fallthru
      _
    // Predicated region
    $region26: #{tpu_custom_call.1} parent=1 // pred_check
      _
    $region27: #{tpu_custom_call.1} parent=1 // pred_check_branch
      %181 = sbr.rel (0) target = $region29
    $region28: #{tpu_custom_call.1} parent=1 // pred_region
      %182 = dma.done [#allocation4], 256
    $region29: #{tpu_custom_call.1} parent=1 // pred_fallthru
      _
    %183 = vsyncpa [#allocation3], 1
    %184 = vsyncpa [#allocation6], 1
    %185 = vsyncpa [#allocation4], 1

</llo_original>
